<compile_context>
chip_gen: v7x
topology: tpu7x:2x2x1
jax: 0.10.0
libtpu: 0.0.40
codegen_flags: <defaults>
</compile_context>

<pallas_src>
import math

import jax
import jax.numpy as jnp
from jax.experimental import pallas as pl
from jax.experimental.pallas import tpu as pltpu


N_FEATURES = 4
# (in_features, out_features) for each Linear, in forward order.
LAYER_DIMS = [
    (N_FEATURES, 100),  # en1
    (100, 50),          # en2
    (50, 10),           # en3
    (10, 3),            # en4
    (3, 10),            # de1
    (10, 50),           # de2
    (50, 100),          # de3
    (100, N_FEATURES),  # de4
]


def _round_up(x, m):
    return ((x + m - 1) // m) * m


def _make_kernel(n_chunks, chunk_size, compute_dtype):
    """Build the AE kernel for a fixed (n_chunks, chunk_size, dtype) config."""

    def kernel(x_ref, *rest):
        wb_refs = rest[:-1]   # 8 fused [out, in+1] weight+bias blocks
        out_ref = rest[-1]

        # Hoist all weight/bias loads: one vload per fused operand (JAX does not
        # CSE repeated ref reads / broadcasts).
        ws, bs = [], []
        for wb_ref, (fin, _) in zip(wb_refs, LAYER_DIMS):
            wb = wb_ref[...]
            ws.append(wb[:, :fin].astype(compute_dtype))   # W: [out, in]
            bs.append(wb[:, fin:fin + 1])                   # b: [out, 1], f32

        def layer(k, h, activate):
            # W @ h + b with f32 accumulation; bias broadcasts across lanes.
            y = jnp.dot(ws[k], h, preferred_element_type=jnp.float32) + bs[k]
            if activate:
                y = jnp.tanh(y.astype(compute_dtype))
            return y

        def forward(h):
            h = h.astype(compute_dtype)
            h = layer(0, h, True)
            h = layer(1, h, True)
            h = layer(2, h, True)
            z = layer(3, h, False)                       # en4: no activation
            d = jnp.tanh(z.astype(compute_dtype))        # decoder tanh's the latent
            d = layer(4, d, True)
            d = layer(5, d, True)
            d = layer(6, d, True)
            return layer(7, d, False)                    # de4: no activation (f32)

        # Independent sub-chunks in one basic block: the LLO scheduler interleaves
        # chunk A's EUP tanh with chunk B's MXU/VALU work.
        for c in range(n_chunks):
            sl = slice(c * chunk_size, (c + 1) * chunk_size)
            out_ref[:, sl] = forward(x_ref[:, sl]).astype(out_ref.dtype)

    return kernel


def ae_3d_200_forward(x, params, *, batch_tile=2048, compute_dtype=jnp.float32):
    """x: [B, n_features] float32. params: list of (W[out,in], b[out]) (PyTorch layout)."""
    B, F = x.shape
    assert F == N_FEATURES

    # --- batch-tile selection -------------------------------------------------
    B128 = _round_up(max(B, 1), 128)
    bt = min(_round_up(max(batch_tile, 128), 128), B128)
    # Give v7x's two TensorCores at least two grid steps when the batch is big
    # enough to split into lane-dense halves (no-op on v5e/v6e).
    if bt == B128 and B128 >= 256:
        bt = _round_up(B128 // 2, 128)
    n_tiles = pl.cdiv(B, bt)
    B_pad = n_tiles * bt

    # Two interleaved sub-chunks inside the kernel when the tile allows it.
    n_chunks = 2 if bt % 256 == 0 else 1
    chunk_size = bt // n_chunks

    # --- inputs ---------------------------------------------------------------
    # Pad the ragged tail then transpose (fusible in XLA; no zeros+scatter copy).
    x_t = jnp.pad(x, ((0, B_pad - B), (0, 0))).T          # [F, B_pad]

    flat_args = []
    in_specs = [pl.BlockSpec((F, bt), lambda i: (0, i))]
    for (w, b) in params:
        # Fuse bias as an extra column: one grid-invariant operand per layer.
        wb = jnp.concatenate([w, b.reshape(-1, 1)], axis=1).astype(jnp.float32)
        flat_args.append(wb)
        in_specs.append(pl.BlockSpec(wb.shape, lambda i: (0, 0)))

    out_spec = pl.BlockSpec((F, bt), lambda i: (0, i))

    grid_spec = pl.GridSpec(
        grid=(n_tiles,),
        in_specs=in_specs,
        out_specs=out_spec,
    )

    flops = 2 * B_pad * sum(i * o for i, o in LAYER_DIMS)
    transcendentals = B_pad * sum(o for _, o in LAYER_DIMS[:-1])  # 323 tanh / sample
    weight_bytes = 4 * sum((i + 1) * o for i, o in LAYER_DIMS)
    cost = pl.CostEstimate(
        flops=flops,
        transcendentals=transcendentals,
        bytes_accessed=4 * 2 * B_pad * F + weight_bytes,
    )

    kernel = _make_kernel(n_chunks, chunk_size, compute_dtype)

    out_t = pl.pallas_call(
        kernel,
        out_shape=jax.ShapeDtypeStruct((F, B_pad), jnp.float32),
        grid_spec=grid_spec,
        compiler_params=pltpu.CompilerParams(
            dimension_semantics=("parallel",)),
        cost_estimate=cost,
    )(x_t, *flat_args)

    return out_t[:, :B].T


def init_params(key):
    """PyTorch nn.Linear-style init: W[out,in], b[out] ~ U(-1/sqrt(in), 1/sqrt(in))."""
    params = []
    for (fan_in, fan_out) in LAYER_DIMS:
        key, kw, kb = jax.random.split(key, 3)
        bound = 1.0 / math.sqrt(fan_in)
        w = jax.random.uniform(kw, (fan_out, fan_in), jnp.float32, -bound, bound)
        b = jax.random.uniform(kb, (fan_out,), jnp.float32, -bound, bound)
        params.append((w, b))
    return params


def reference_forward(x, params):
    """Plain-JAX reference (PyTorch semantics: y = x @ W.T + b)."""
    def linear(h, p):
        return h @ p[0].T + p[1]
    h = jnp.tanh(linear(x, params[0]))
    h = jnp.tanh(linear(h, params[1]))
    h = jnp.tanh(linear(h, params[2]))
    z = linear(h, params[3])
    d = jnp.tanh(z)
    d = jnp.tanh(linear(d, params[4]))
    d = jnp.tanh(linear(d, params[5]))
    d = jnp.tanh(linear(d, params[6]))
    return linear(d, params[7])


if __name__ == "__main__":
    key = jax.random.PRNGKey(0)
    kx, kp, kx2 = jax.random.split(key, 3)

    params = init_params(kp)

    # Small smoke test (single tile, single in-kernel chunk).
    x = jax.random.normal(kx, (8, N_FEATURES), jnp.float32)
    out = jax.block_until_ready(ae_3d_200_forward(x, params))
    ref = reference_forward(x, params)
    assert out.shape == (8, N_FEATURES)
    assert jnp.allclose(out, ref, atol=1e-5, rtol=1e-5), (
        f"max abs err {jnp.max(jnp.abs(out - ref))}")

    # Multi-tile + interleaved two-chunk path with a ragged batch.
    x2 = jax.random.normal(kx2, (300, N_FEATURES), jnp.float32)
    out2 = jax.block_until_ready(ae_3d_200_forward(x2, params, batch_tile=256))
    ref2 = reference_forward(x2, params)
    assert out2.shape == (300, N_FEATURES)
    assert jnp.allclose(out2, ref2, atol=1e-5, rtol=1e-5), (
        f"max abs err {jnp.max(jnp.abs(out2 - ref2))}")

    print("KERNEL_OK")
</pallas_src>

<mosaic_0001>
module attributes {stable_mosaic.version = 11 : i64} {
  func.func @kernel(%arg0: i32, %arg1: memref<4x128xf32, #tpu.memory_space<vmem>>, %arg2: memref<100x5xf32, #tpu.memory_space<vmem>>, %arg3: memref<50x101xf32, #tpu.memory_space<vmem>>, %arg4: memref<10x51xf32, #tpu.memory_space<vmem>>, %arg5: memref<3x11xf32, #tpu.memory_space<vmem>>, %arg6: memref<10x4xf32, #tpu.memory_space<vmem>>, %arg7: memref<50x11xf32, #tpu.memory_space<vmem>>, %arg8: memref<100x51xf32, #tpu.memory_space<vmem>>, %arg9: memref<4x101xf32, #tpu.memory_space<vmem>>, %arg10: memref<4x128xf32, #tpu.memory_space<vmem>>) attributes {dimension_semantics = [#tpu.dimension_semantics<parallel>], iteration_bounds = array<i64: 1>, scalar_prefetch = 0 : i64, scratch_operands = 0 : i64, tpu.core_type = #tpu.core_type<tc>, window_params = [{transform_indices = @transform_0, window_bounds = array<i64: 4, 128>}, {pipeline_mode = #tpu.pipeline_mode<synchronous>, transform_indices = @transform_1, window_bounds = array<i64: 100, 5>}, {pipeline_mode = #tpu.pipeline_mode<synchronous>, transform_indices = @transform_2, window_bounds = array<i64: 50, 101>}, {pipeline_mode = #tpu.pipeline_mode<synchronous>, transform_indices = @transform_3, window_bounds = array<i64: 10, 51>}, {pipeline_mode = #tpu.pipeline_mode<synchronous>, transform_indices = @transform_4, window_bounds = array<i64: 3, 11>}, {pipeline_mode = #tpu.pipeline_mode<synchronous>, transform_indices = @transform_5, window_bounds = array<i64: 10, 4>}, {pipeline_mode = #tpu.pipeline_mode<synchronous>, transform_indices = @transform_6, window_bounds = array<i64: 50, 11>}, {pipeline_mode = #tpu.pipeline_mode<synchronous>, transform_indices = @transform_7, window_bounds = array<i64: 100, 51>}, {pipeline_mode = #tpu.pipeline_mode<synchronous>, transform_indices = @transform_8, window_bounds = array<i64: 4, 101>}, {transform_indices = @transform_9, window_bounds = array<i64: 4, 128>}]} {
    %c0 = arith.constant 0 : index
    %c0_0 = arith.constant 0 : index
    %0 = vector.load %arg2[%c0, %c0_0] : memref<100x5xf32, #tpu.memory_space<vmem>>, vector<100x5xf32>
    %1 = vector.extract_strided_slice %0 {offsets = [0, 0], sizes = [100, 4], strides = [1, 1]} : vector<100x5xf32> to vector<100x4xf32>
    %2 = vector.extract_strided_slice %0 {offsets = [0, 4], sizes = [100, 1], strides = [1, 1]} : vector<100x5xf32> to vector<100x1xf32>
    %c0_1 = arith.constant 0 : index
    %c0_2 = arith.constant 0 : index
    %3 = vector.load %arg3[%c0_1, %c0_2] : memref<50x101xf32, #tpu.memory_space<vmem>>, vector<50x101xf32>
    %4 = vector.extract_strided_slice %3 {offsets = [0, 0], sizes = [50, 100], strides = [1, 1]} : vector<50x101xf32> to vector<50x100xf32>
    %5 = vector.extract_strided_slice %3 {offsets = [0, 100], sizes = [50, 1], strides = [1, 1]} : vector<50x101xf32> to vector<50x1xf32>
    %c0_3 = arith.constant 0 : index
    %c0_4 = arith.constant 0 : index
    %6 = vector.load %arg4[%c0_3, %c0_4] : memref<10x51xf32, #tpu.memory_space<vmem>>, vector<10x51xf32>
    %7 = vector.extract_strided_slice %6 {offsets = [0, 0], sizes = [10, 50], strides = [1, 1]} : vector<10x51xf32> to vector<10x50xf32>
    %8 = vector.extract_strided_slice %6 {offsets = [0, 50], sizes = [10, 1], strides = [1, 1]} : vector<10x51xf32> to vector<10x1xf32>
    %c0_5 = arith.constant 0 : index
    %c0_6 = arith.constant 0 : index
    %9 = vector.load %arg5[%c0_5, %c0_6] : memref<3x11xf32, #tpu.memory_space<vmem>>, vector<3x11xf32>
    %10 = vector.extract_strided_slice %9 {offsets = [0, 0], sizes = [3, 10], strides = [1, 1]} : vector<3x11xf32> to vector<3x10xf32>
    %11 = vector.extract_strided_slice %9 {offsets = [0, 10], sizes = [3, 1], strides = [1, 1]} : vector<3x11xf32> to vector<3x1xf32>
    %c0_7 = arith.constant 0 : index
    %c0_8 = arith.constant 0 : index
    %12 = vector.load %arg6[%c0_7, %c0_8] : memref<10x4xf32, #tpu.memory_space<vmem>>, vector<10x4xf32>
    %13 = vector.extract_strided_slice %12 {offsets = [0, 0], sizes = [10, 3], strides = [1, 1]} : vector<10x4xf32> to vector<10x3xf32>
    %14 = vector.extract_strided_slice %12 {offsets = [0, 3], sizes = [10, 1], strides = [1, 1]} : vector<10x4xf32> to vector<10x1xf32>
    %c0_9 = arith.constant 0 : index
    %c0_10 = arith.constant 0 : index
    %15 = vector.load %arg7[%c0_9, %c0_10] : memref<50x11xf32, #tpu.memory_space<vmem>>, vector<50x11xf32>
    %16 = vector.extract_strided_slice %15 {offsets = [0, 0], sizes = [50, 10], strides = [1, 1]} : vector<50x11xf32> to vector<50x10xf32>
    %17 = vector.extract_strided_slice %15 {offsets = [0, 10], sizes = [50, 1], strides = [1, 1]} : vector<50x11xf32> to vector<50x1xf32>
    %c0_11 = arith.constant 0 : index
    %c0_12 = arith.constant 0 : index
    %18 = vector.load %arg8[%c0_11, %c0_12] : memref<100x51xf32, #tpu.memory_space<vmem>>, vector<100x51xf32>
    %19 = vector.extract_strided_slice %18 {offsets = [0, 0], sizes = [100, 50], strides = [1, 1]} : vector<100x51xf32> to vector<100x50xf32>
    %20 = vector.extract_strided_slice %18 {offsets = [0, 50], sizes = [100, 1], strides = [1, 1]} : vector<100x51xf32> to vector<100x1xf32>
    %c0_13 = arith.constant 0 : index
    %c0_14 = arith.constant 0 : index
    %21 = vector.load %arg9[%c0_13, %c0_14] : memref<4x101xf32, #tpu.memory_space<vmem>>, vector<4x101xf32>
    %22 = vector.extract_strided_slice %21 {offsets = [0, 0], sizes = [4, 100], strides = [1, 1]} : vector<4x101xf32> to vector<4x100xf32>
    %23 = vector.extract_strided_slice %21 {offsets = [0, 100], sizes = [4, 1], strides = [1, 1]} : vector<4x101xf32> to vector<4x1xf32>
    %c0_15 = arith.constant 0 : index
    %c0_16 = arith.constant 0 : index
    %24 = vector.load %arg1[%c0_15, %c0_16] : memref<4x128xf32, #tpu.memory_space<vmem>>, vector<4x128xf32>
    %cst = arith.constant dense<0.000000e+00> : vector<100x128xf32>
    %25 = tpu.matmul %1, %24, %cst {dimension_numbers = #tpu.dot_dimension_numbers<[1], [0], [0], [1], [0, 0, 1, 1], [], []>} : vector<100x4xf32>, vector<4x128xf32>, vector<100x128xf32> -> vector<100x128xf32>
    %26 = vector.broadcast %2 : vector<100x1xf32> to vector<100x128xf32>
    %27 = arith.addf %25, %26 : vector<100x128xf32>
    %28 = math.tanh %27 : vector<100x128xf32>
    %cst_17 = arith.constant dense<0.000000e+00> : vector<50x128xf32>
    %29 = tpu.matmul %4, %28, %cst_17 {dimension_numbers = #tpu.dot_dimension_numbers<[1], [0], [0], [1], [0, 0, 1, 1], [], []>} : vector<50x100xf32>, vector<100x128xf32>, vector<50x128xf32> -> vector<50x128xf32>
    %30 = vector.broadcast %5 : vector<50x1xf32> to vector<50x128xf32>
    %31 = arith.addf %29, %30 : vector<50x128xf32>
    %32 = math.tanh %31 : vector<50x128xf32>
    %cst_18 = arith.constant dense<0.000000e+00> : vector<10x128xf32>
    %33 = tpu.matmul %7, %32, %cst_18 {dimension_numbers = #tpu.dot_dimension_numbers<[1], [0], [0], [1], [0, 0, 1, 1], [], []>} : vector<10x50xf32>, vector<50x128xf32>, vector<10x128xf32> -> vector<10x128xf32>
    %34 = vector.broadcast %8 : vector<10x1xf32> to vector<10x128xf32>
    %35 = arith.addf %33, %34 : vector<10x128xf32>
    %36 = math.tanh %35 : vector<10x128xf32>
    %cst_19 = arith.constant dense<0.000000e+00> : vector<3x128xf32>
    %37 = tpu.matmul %10, %36, %cst_19 {dimension_numbers = #tpu.dot_dimension_numbers<[1], [0], [0], [1], [0, 0, 1, 1], [], []>} : vector<3x10xf32>, vector<10x128xf32>, vector<3x128xf32> -> vector<3x128xf32>
    %38 = vector.broadcast %11 : vector<3x1xf32> to vector<3x128xf32>
    %39 = arith.addf %37, %38 : vector<3x128xf32>
    %40 = math.tanh %39 : vector<3x128xf32>
    %cst_20 = arith.constant dense<0.000000e+00> : vector<10x128xf32>
    %41 = tpu.matmul %13, %40, %cst_20 {dimension_numbers = #tpu.dot_dimension_numbers<[1], [0], [0], [1], [0, 0, 1, 1], [], []>} : vector<10x3xf32>, vector<3x128xf32>, vector<10x128xf32> -> vector<10x128xf32>
    %42 = vector.broadcast %14 : vector<10x1xf32> to vector<10x128xf32>
    %43 = arith.addf %41, %42 : vector<10x128xf32>
    %44 = math.tanh %43 : vector<10x128xf32>
    %cst_21 = arith.constant dense<0.000000e+00> : vector<50x128xf32>
    %45 = tpu.matmul %16, %44, %cst_21 {dimension_numbers = #tpu.dot_dimension_numbers<[1], [0], [0], [1], [0, 0, 1, 1], [], []>} : vector<50x10xf32>, vector<10x128xf32>, vector<50x128xf32> -> vector<50x128xf32>
    %46 = vector.broadcast %17 : vector<50x1xf32> to vector<50x128xf32>
    %47 = arith.addf %45, %46 : vector<50x128xf32>
    %48 = math.tanh %47 : vector<50x128xf32>
    %cst_22 = arith.constant dense<0.000000e+00> : vector<100x128xf32>
    %49 = tpu.matmul %19, %48, %cst_22 {dimension_numbers = #tpu.dot_dimension_numbers<[1], [0], [0], [1], [0, 0, 1, 1], [], []>} : vector<100x50xf32>, vector<50x128xf32>, vector<100x128xf32> -> vector<100x128xf32>
    %50 = vector.broadcast %20 : vector<100x1xf32> to vector<100x128xf32>
    %51 = arith.addf %49, %50 : vector<100x128xf32>
    %52 = math.tanh %51 : vector<100x128xf32>
    %cst_23 = arith.constant dense<0.000000e+00> : vector<4x128xf32>
    %53 = tpu.matmul %22, %52, %cst_23 {dimension_numbers = #tpu.dot_dimension_numbers<[1], [0], [0], [1], [0, 0, 1, 1], [], []>} : vector<4x100xf32>, vector<100x128xf32>, vector<4x128xf32> -> vector<4x128xf32>
    %54 = vector.broadcast %23 : vector<4x1xf32> to vector<4x128xf32>
    %55 = arith.addf %53, %54 : vector<4x128xf32>
    %c0_24 = arith.constant 0 : index
    %c0_25 = arith.constant 0 : index
    %56 = vector.load %arg10[%c0_24, %c0_25] : memref<4x128xf32, #tpu.memory_space<vmem>>, vector<4x128xf32>
    tpu.vector_store %arg10[%c0_24, %c0_25], %55 {strides = array<i32>} : memref<4x128xf32, #tpu.memory_space<vmem>>, vector<4x128xf32>,
    return
  }
  func.func @transform_0(%arg0: i32) -> (i32, i32) {
    %c0_i32 = arith.constant 0 : i32
    %c0_i32_0 = arith.constant 0 : i32
    return %c0_i32, %arg0 : i32, i32
  }
  func.func @transform_1(%arg0: i32) -> (i32, i32) {
    %c0_i32 = arith.constant 0 : i32
    %c0_i32_0 = arith.constant 0 : i32
    %c0_i32_1 = arith.constant 0 : i32
    return %c0_i32, %c0_i32_0 : i32, i32
  }
  func.func @transform_2(%arg0: i32) -> (i32, i32) {
    %c0_i32 = arith.constant 0 : i32
    %c0_i32_0 = arith.constant 0 : i32
    %c0_i32_1 = arith.constant 0 : i32
    return %c0_i32, %c0_i32_0 : i32, i32
  }
  func.func @transform_3(%arg0: i32) -> (i32, i32) {
    %c0_i32 = arith.constant 0 : i32
    %c0_i32_0 = arith.constant 0 : i32
    %c0_i32_1 = arith.constant 0 : i32
    return %c0_i32, %c0_i32_0 : i32, i32
  }
  func.func @transform_4(%arg0: i32) -> (i32, i32) {
    %c0_i32 = arith.constant 0 : i32
    %c0_i32_0 = arith.constant 0 : i32
    %c0_i32_1 = arith.constant 0 : i32
    return %c0_i32, %c0_i32_0 : i32, i32
  }
  func.func @transform_5(%arg0: i32) -> (i32, i32) {
    %c0_i32 = arith.constant 0 : i32
    %c0_i32_0 = arith.constant 0 : i32
    %c0_i32_1 = arith.constant 0 : i32
    return %c0_i32, %c0_i32_0 : i32, i32
  }
  func.func @transform_6(%arg0: i32) -> (i32, i32) {
    %c0_i32 = arith.constant 0 : i32
    %c0_i32_0 = arith.constant 0 : i32
    %c0_i32_1 = arith.constant 0 : i32
    return %c0_i32, %c0_i32_0 : i32, i32
  }
  func.func @transform_7(%arg0: i32) -> (i32, i32) {
    %c0_i32 = arith.constant 0 : i32
    %c0_i32_0 = arith.constant 0 : i32
    %c0_i32_1 = arith.constant 0 : i32
    return %c0_i32, %c0_i32_0 : i32, i32
  }
  func.func @transform_8(%arg0: i32) -> (i32, i32) {
    %c0_i32 = arith.constant 0 : i32
    %c0_i32_0 = arith.constant 0 : i32
    %c0_i32_1 = arith.constant 0 : i32
    return %c0_i32, %c0_i32_0 : i32, i32
  }
  func.func @transform_9(%arg0: i32) -> (i32, i32) {
    %c0_i32 = arith.constant 0 : i32
    %c0_i32_0 = arith.constant 0 : i32
    return %c0_i32, %arg0 : i32, i32
  }
}

</mosaic_0001>

<llo_original>
// kernel: tpu_custom_call.1
$region0: #{tpu_custom_call.1}
  #allocation0 [shape = 'u32[]', space=smem, size = 0x4, offset = 0x4, fixed_abs, tag = 'smem constant byte address 0x4 - core index']
  #allocation1 [shape = 'u32[144,128]{1,0:T(1,128)}', space=vmem, size = 0x12000, scoped, tag = 'internal scratch']
  %s0 = inlined_call_operand.vmem [shape: f32[4,128], index: 0, kind: input, shape index: {}]
  %s1 = inlined_call_operand.vmem [shape: f32[100,5], index: 1, kind: input, shape index: {}]
  %s2 = inlined_call_operand.vmem [shape: f32[50,101], index: 2, kind: input, shape index: {}]
  %s3 = inlined_call_operand.vmem [shape: f32[10,51], index: 3, kind: input, shape index: {}]
  %s4 = inlined_call_operand.vmem [shape: f32[3,11], index: 4, kind: input, shape index: {}]
  %s5 = inlined_call_operand.vmem [shape: f32[10,4], index: 5, kind: input, shape index: {}]
  %s6 = inlined_call_operand.vmem [shape: f32[50,11], index: 6, kind: input, shape index: {}]
  %s7 = inlined_call_operand.vmem [shape: f32[100,51], index: 7, kind: input, shape index: {}]
  %s8 = inlined_call_operand.vmem [shape: f32[4,101], index: 8, kind: input, shape index: {}]
  %s9 = inlined_call_operand.hbm [shape: f32[4,128], index: 9, kind: output, shape index: {}]
  %s10 = sld [smem:[#allocation0]]
  $region46: #{tpu_custom_call.1} parent=0
    _
  %s12 = ssub.s32 1, %s10
  %s13 = scalar_select 0, %s12, %s10
  $region1: #{tpu_custom_call.1} parent=0
    #allocation2 [shape = 'u8[2048]{0}', space=vmem, size = 0x800, scoped, tag = 'output window, operand 0, single buffered']
    #allocation3 [shape = 's32[1]{0}', space=sflag, size = 0x4, scoped, tag = 'scoped memory for tpu_custom_call.1']
    %14 = vsyncpa [#allocation3], 0
    // Predicated region
    $region2: #{tpu_custom_call.1} parent=1 // pred_check
      _
    $region3: #{tpu_custom_call.1} parent=1 // pred_check_branch
      %16 = sbr.rel (0) target = $region5
    $region4: #{tpu_custom_call.1} parent=1 // pred_region
      _
    $region5: #{tpu_custom_call.1} parent=1 // pred_fallthru
      _
    // Predicated region
    $region6: #{tpu_custom_call.1} parent=1 // pred_check
      _
    $region7: #{tpu_custom_call.1} parent=1 // pred_check_branch
      %18 = sbr.rel (0) target = $region9
    $region8: #{tpu_custom_call.1} parent=1 // pred_region
      _
    $region9: #{tpu_custom_call.1} parent=1 // pred_fallthru
      _
    // Predicated region
    $region10: #{tpu_custom_call.1} parent=1 // pred_check
      _
    $region11: #{tpu_custom_call.1} parent=1 // pred_check_branch
      %20 = sbr.rel (0) target = $region13
    $region12: #{tpu_custom_call.1} parent=1 // pred_region
      _
    $region13: #{tpu_custom_call.1} parent=1 // pred_fallthru
      _
    // Predicated region
    $region14: #{tpu_custom_call.1} parent=1 // pred_check
      _
    $region15: #{tpu_custom_call.1} parent=1 // pred_check_branch
      %22 = sbr.rel (0) target = $region17
    $region16: #{tpu_custom_call.1} parent=1 // pred_region
      _
    $region17: #{tpu_custom_call.1} parent=1 // pred_fallthru
      _
    // Predicated region
    $region18: #{tpu_custom_call.1} parent=1 // pred_check
      _
    $region19: #{tpu_custom_call.1} parent=1 // pred_check_branch
      %24 = sbr.rel (0) target = $region21
    $region20: #{tpu_custom_call.1} parent=1 // pred_region
      _
    $region21: #{tpu_custom_call.1} parent=1 // pred_fallthru
      _
    // Predicated region
    $region22: #{tpu_custom_call.1} parent=1 // pred_check
      _
    $region23: #{tpu_custom_call.1} parent=1 // pred_check_branch
      %26 = sbr.rel (0) target = $region25
    $region24: #{tpu_custom_call.1} parent=1 // pred_region
      _
    $region25: #{tpu_custom_call.1} parent=1 // pred_fallthru
      _
    // Predicated region
    $region26: #{tpu_custom_call.1} parent=1 // pred_check
      _
    $region27: #{tpu_custom_call.1} parent=1 // pred_check_branch
      %28 = sbr.rel (0) target = $region29
    $region28: #{tpu_custom_call.1} parent=1 // pred_region
      _
    $region29: #{tpu_custom_call.1} parent=1 // pred_fallthru
      _
    // Predicated region
    $region30: #{tpu_custom_call.1} parent=1 // pred_check
      _
    $region31: #{tpu_custom_call.1} parent=1 // pred_check_branch
      %30 = sbr.rel (0) target = $region33
    $region32: #{tpu_custom_call.1} parent=1 // pred_region
      _
    $region33: #{tpu_custom_call.1} parent=1 // pred_fallthru
      _
    // Predicated region
    $region34: #{tpu_custom_call.1} parent=1 // pred_check
      _
    $region35: #{tpu_custom_call.1} parent=1 // pred_check_branch
      %32 = sbr.rel (0) target = $region37
    $region36: #{tpu_custom_call.1} parent=1 // pred_region
      _
    $region37: #{tpu_custom_call.1} parent=1 // pred_fallthru
      _
    %v33 = vld [vmem:[%s1] sm:$0xff]
    %v34 = vld [vmem:[%s1 + $0x8] sm:$0xff]
    %v35 = vld [vmem:[%s1 + $0x10] sm:$0xff]
    %v36 = vld [vmem:[%s1 + $0x18] sm:$0xff]
    %v37 = vld [vmem:[%s1 + $0x20] sm:$0xff]
    %v38 = vld [vmem:[%s1 + $0x28] sm:$0xff]
    %v39 = vld [vmem:[%s1 + $0x30] sm:$0xff]
    %v40 = vld [vmem:[%s1 + $0x38] sm:$0xff]
    %v41 = vld [vmem:[%s1 + $0x40] sm:$0xff]
    %v42 = vld [vmem:[%s1 + $0x48] sm:$0xff]
    %v43 = vld [vmem:[%s1 + $0x50] sm:$0xff]
    %v44 = vld [vmem:[%s1 + $0x58] sm:$0xff]
    %v45 = vld [vmem:[%s1 + $0x60] sm:$0xf]
    %v46 = vld [vmem:[%s2] sm:$0xff]
    %v47 = vld [vmem:[%s2 + $0x8] sm:$0xff]
    %v48 = vld [vmem:[%s2 + $0x10] sm:$0xff]
    %v49 = vld [vmem:[%s2 + $0x18] sm:$0xff]
    %v50 = vld [vmem:[%s2 + $0x20] sm:$0xff]
    %v51 = vld [vmem:[%s2 + $0x28] sm:$0xff]
    %v52 = vld [vmem:[%s2 + $0x30] sm:$0x3]
    %v53 = vld [vmem:[%s3] sm:$0xff]
    %v54 = vld [vmem:[%s3 + $0x8] sm:$0x3]
    %v55 = vld [vmem:[%s4] sm:$0x7]
    %v56 = vld [vmem:[%s5] sm:$0xff]
    %v57 = vld [vmem:[%s5 + $0x8] sm:$0x3]
    %v58 = vld [vmem:[%s6] sm:$0xff]
    %v59 = vld [vmem:[%s6 + $0x8] sm:$0xff]
    %v60 = vld [vmem:[%s6 + $0x10] sm:$0xff]
    %v61 = vld [vmem:[%s6 + $0x18] sm:$0xff]
    %v62 = vld [vmem:[%s6 + $0x20] sm:$0xff]
    %v63 = vld [vmem:[%s6 + $0x28] sm:$0xff]
    %v64 = vld [vmem:[%s6 + $0x30] sm:$0x3]
    %v65 = vld [vmem:[%s7] sm:$0xff]
    %v66 = vld [vmem:[%s7 + $0x8] sm:$0xff]
    %v67 = vld [vmem:[%s7 + $0x10] sm:$0xff]
    %v68 = vld [vmem:[%s7 + $0x18] sm:$0xff]
    %v69 = vld [vmem:[%s7 + $0x20] sm:$0xff]
    %v70 = vld [vmem:[%s7 + $0x28] sm:$0xff]
    %v71 = vld [vmem:[%s7 + $0x30] sm:$0xff]
    %v72 = vld [vmem:[%s7 + $0x38] sm:$0xff]
    %v73 = vld [vmem:[%s7 + $0x40] sm:$0xff]
    %v74 = vld [vmem:[%s7 + $0x48] sm:$0xff]
    %v75 = vld [vmem:[%s7 + $0x50] sm:$0xff]
    %v76 = vld [vmem:[%s7 + $0x58] sm:$0xff]
    %v77 = vld [vmem:[%s7 + $0x60] sm:$0xf]
    %v78 = vld [vmem:[%s8] sm:$0xf]
    %v79 = vld [vmem:[%s0] sm:$0xf]
    %81 = vset.pattern.permute.xlu0 4
    %82 = vperm.xlu0 %81, %v33
    %v83 = vpop.permute.xlu0 %82
    %86 = vset.pattern.permute.xlu0 4
    %87 = vperm.xlu0 %86, %v34
    %v88 = vpop.permute.xlu0 %87
    %91 = vset.pattern.permute.xlu0 4
    %92 = vperm.xlu0 %91, %v35
    %v93 = vpop.permute.xlu0 %92
    %96 = vset.pattern.permute.xlu0 4
    %97 = vperm.xlu0 %96, %v36
    %v98 = vpop.permute.xlu0 %97
    %101 = vset.pattern.permute.xlu0 4
    %102 = vperm.xlu0 %101, %v37
    %v103 = vpop.permute.xlu0 %102
    %106 = vset.pattern.permute.xlu0 4
    %107 = vperm.xlu0 %106, %v38
    %v108 = vpop.permute.xlu0 %107
    %111 = vset.pattern.permute.xlu0 4
    %112 = vperm.xlu0 %111, %v39
    %v113 = vpop.permute.xlu0 %112
    %116 = vset.pattern.permute.xlu0 4
    %117 = vperm.xlu0 %116, %v40
    %v118 = vpop.permute.xlu0 %117
    %121 = vset.pattern.permute.xlu0 4
    %122 = vperm.xlu0 %121, %v41
    %v123 = vpop.permute.xlu0 %122
    %126 = vset.pattern.permute.xlu0 4
    %127 = vperm.xlu0 %126, %v42
    %v128 = vpop.permute.xlu0 %127
    %131 = vset.pattern.permute.xlu0 4
    %132 = vperm.xlu0 %131, %v43
    %v133 = vpop.permute.xlu0 %132
    %136 = vset.pattern.permute.xlu0 4
    %137 = vperm.xlu0 %136, %v44
    %v138 = vpop.permute.xlu0 %137
    %141 = vset.pattern.permute.xlu0 4
    %142 = vperm.xlu0 %141, %v45
    %v143 = vpop.permute.xlu0 %142
    %vm145 = vcmask 31744
    %v146 = vsel %vm145, %v33, 0
    %v148 = vsel %vm145, %v34, 0
    %v150 = vsel %vm145, %v35, 0
    %v152 = vsel %vm145, %v36, 0
    %v154 = vsel %vm145, %v37, 0
    %v156 = vsel %vm145, %v38, 0
    %v158 = vsel %vm145, %v39, 0
    %v160 = vsel %vm145, %v40, 0
    %v162 = vsel %vm145, %v41, 0
    %v164 = vsel %vm145, %v42, 0
    %v166 = vsel %vm145, %v43, 0
    %v168 = vsel %vm145, %v44, 0
    %v170 = vsel %vm145, %v45, 0
    %vm172 = vcmask 1043456
    %v174 = vsel %vm172, %v79, 0
    %176 = vmatprep.subr.mxu0 0.0
    %177 = vmatpush1.msra.mxu0 %v174
    %178 = vmatprep.subr.mxu0 0.0
    %179 = vmatpush1.msra.mxu0 0.0
    %180 = vmatprep.subr.mxu0 0.0
    %181 = vmatpush1.msra.mxu0 0.0
    %182 = vmatprep.subr.mxu0 0.0
    %183 = vmatpush1.msra.mxu0 0.0
    %184 = vmatprep.subr.mxu0 0.0
    %185 = vmatpush1.msra.mxu0 0.0
    %186 = vmatprep.subr.mxu0 0.0
    %187 = vmatpush1.msra.mxu0 0.0
    %188 = vmatprep.subr.mxu0 0.0
    %189 = vmatpush1.msra.mxu0 0.0
    %190 = vmatprep.subr.mxu0 0.0
    %191 = vmatpush1.msra.mxu0 0.0
    %192 = vmatprep.subr.mxu0 0.0
    %193 = vmatpush1.msra.mxu0 0.0
    %194 = vmatprep.subr.mxu0 0.0
    %195 = vmatpush1.msra.mxu0 0.0
    %196 = vmatprep.subr.mxu0 0.0
    %197 = vmatpush1.msra.mxu0 0.0
    %198 = vmatprep.subr.mxu0 0.0
    %199 = vmatpush1.msra.mxu0 0.0
    %200 = vmatprep.subr.mxu0 0.0
    %201 = vmatpush1.msra.mxu0 0.0
    %202 = vmatprep.subr.mxu0 0.0
    %203 = vmatpush1.msra.mxu0 0.0
    %204 = vmatprep.subr.mxu0 0.0
    %205 = vmatpush1.msra.mxu0 0.0
    %206 = vmatprep.subr.mxu0 0.0
    %207 = vmatpush1.msra.mxu0 0.0
    %208 = vmatprep.subr.mxu0 0.0
    %209 = vmatpush1.msra.mxu0 0.0
    %210 = vmatprep.subr.mxu0 0.0
    %211 = vmatpush1.msra.mxu0 0.0
    %212 = vmatprep.subr.mxu0 0.0
    %213 = vmatpush1.msra.mxu0 0.0
    %214 = vmatprep.subr.mxu0 0.0
    %215 = vmatpush1.msra.mxu0 0.0
    %216 = vmatprep.subr.mxu0 0.0
    %217 = vmatpush1.msra.mxu0 0.0
    %218 = vmatprep.subr.mxu0 0.0
    %219 = vmatpush1.msra.mxu0 0.0
    %220 = vmatprep.subr.mxu0 0.0
    %221 = vmatpush1.msra.mxu0 0.0
    %222 = vmatprep.subr.mxu0 0.0
    %223 = vmatpush1.msra.mxu0 0.0
    %224 = vmatprep.subr.mxu0 0.0
    %225 = vmatpush1.msra.mxu0 0.0
    %226 = vmatprep.subr.mxu0 0.0
    %227 = vmatpush1.msra.mxu0 0.0
    %228 = vmatprep.subr.mxu0 0.0
    %229 = vmatpush1.msra.mxu0 0.0
    %230 = vmatprep.subr.mxu0 0.0
    %231 = vmatpush1.msra.mxu0 0.0
    %232 = vmatprep.subr.mxu0 0.0
    %233 = vmatpush1.msra.mxu0 0.0
    %234 = vmatprep.subr.mxu0 0.0
    %235 = vmatpush1.msra.mxu0 0.0
    %236 = vmatprep.subr.mxu0 0.0
    %237 = vmatpush1.msra.mxu0 0.0
    %238 = vmatprep.subr.mxu0 0.0
    %239 = vmatpush1.msra.mxu0 0.0
    %240 = vmatprep.mubr.f32.mxu0 0.0
    %241 = vmatmul.mubr.f32.gmra.mrb[0].mxu0 %v146
    %v242 = vpop.f32.mrb[0].mxu0
    %v243 = vadd.f32 %v83, %v242
    %v244 = vpop.f32.mrb[0].mxu0
    %245 = vmatprep.mubr.f32.mxu0 0.0
    %246 = vmatmul.mubr.f32.gmra.mrb[0].mxu0 %v148
    %v247 = vpop.f32.mrb[0].mxu0
    %v248 = vadd.f32 %v88, %v247
    %v249 = vpop.f32.mrb[0].mxu0
    %250 = vmatprep.mubr.f32.mxu0 0.0
    %251 = vmatmul.mubr.f32.gmra.mrb[0].mxu0 %v150
    %v252 = vpop.f32.mrb[0].mxu0
    %v253 = vadd.f32 %v93, %v252
    %v254 = vpop.f32.mrb[0].mxu0
    %255 = vmatprep.mubr.f32.mxu0 0.0
    %256 = vmatmul.mubr.f32.gmra.mrb[0].mxu0 %v152
    %v257 = vpop.f32.mrb[0].mxu0
    %v258 = vadd.f32 %v98, %v257
    %v259 = vpop.f32.mrb[0].mxu0
    %260 = vmatprep.mubr.f32.mxu0 0.0
    %261 = vmatmul.mubr.f32.gmra.mrb[0].mxu0 %v154
    %v262 = vpop.f32.mrb[0].mxu0
    %v263 = vadd.f32 %v103, %v262
    %v264 = vpop.f32.mrb[0].mxu0
    %265 = vmatprep.mubr.f32.mxu0 0.0
    %266 = vmatmul.mubr.f32.gmra.mrb[0].mxu0 %v156
    %v267 = vpop.f32.mrb[0].mxu0
    %v268 = vadd.f32 %v108, %v267
    %v269 = vpop.f32.mrb[0].mxu0
    %270 = vmatprep.mubr.f32.mxu0 0.0
    %271 = vmatmul.mubr.f32.gmra.mrb[0].mxu0 %v158
    %v272 = vpop.f32.mrb[0].mxu0
    %v273 = vadd.f32 %v113, %v272
    %v274 = vpop.f32.mrb[0].mxu0
    %275 = vmatprep.mubr.f32.mxu0 0.0
    %276 = vmatmul.mubr.f32.gmra.mrb[0].mxu0 %v160
    %v277 = vpop.f32.mrb[0].mxu0
    %v278 = vadd.f32 %v118, %v277
    %v279 = vpop.f32.mrb[0].mxu0
    %280 = vmatprep.mubr.f32.mxu0 0.0
    %281 = vmatmul.mubr.f32.gmra.mrb[0].mxu0 %v162
    %v282 = vpop.f32.mrb[0].mxu0
    %v283 = vadd.f32 %v123, %v282
    %v284 = vpop.f32.mrb[0].mxu0
    %285 = vmatprep.mubr.f32.mxu0 0.0
    %286 = vmatmul.mubr.f32.gmra.mrb[0].mxu0 %v164
    %v287 = vpop.f32.mrb[0].mxu0
    %v288 = vadd.f32 %v128, %v287
    %v289 = vpop.f32.mrb[0].mxu0
    %290 = vmatprep.mubr.f32.mxu0 0.0
    %291 = vmatmul.mubr.f32.gmra.mrb[0].mxu0 %v166
    %v292 = vpop.f32.mrb[0].mxu0
    %v293 = vadd.f32 %v133, %v292
    %v294 = vpop.f32.mrb[0].mxu0
    %295 = vmatprep.mubr.f32.mxu0 0.0
    %296 = vmatmul.mubr.f32.gmra.mrb[0].mxu0 %v168
    %v297 = vpop.f32.mrb[0].mxu0
    %v298 = vadd.f32 %v138, %v297
    %v299 = vpop.f32.mrb[0].mxu0
    %300 = vmatprep.mubr.f32.mxu0 0.0
    %301 = vmatmul.mubr.f32.gmra.mrb[0].mxu0 %v170
    %v302 = vpop.f32.mrb[0].mxu0
    %v303 = vadd.f32 %v143, %v302
    %v304 = vpop.f32.mrb[0].mxu0
    %305 = vdwg.mxu0
    %v306 = vtanh.pop %v243
    %v307 = vtanh.pop %v248
    %v308 = vtanh.pop %v253
    %v309 = vtanh.pop %v258
    %v310 = vtanh.pop %v263
    %v311 = vtanh.pop %v268
    %v312 = vtanh.pop %v273
    %v313 = vtanh.pop %v278
    %v314 = vtanh.pop %v283
    %v315 = vtanh.pop %v288
    %v316 = vtanh.pop %v293
    %v317 = vtanh.pop %v298
    %v318 = vtanh.pop %v303
    %320 = vset.pattern.permute.xlu0 100
    %321 = vperm.xlu0 %320, %v46
    %v322 = vpop.permute.xlu0 %321
    %325 = vset.pattern.permute.xlu0 100
    %326 = vperm.xlu0 %325, %v47
    %v327 = vpop.permute.xlu0 %326
    %330 = vset.pattern.permute.xlu0 100
    %331 = vperm.xlu0 %330, %v48
    %v332 = vpop.permute.xlu0 %331
    %335 = vset.pattern.permute.xlu0 100
    %336 = vperm.xlu0 %335, %v49
    %v337 = vpop.permute.xlu0 %336
    %340 = vset.pattern.permute.xlu0 100
    %341 = vperm.xlu0 %340, %v50
    %v342 = vpop.permute.xlu0 %341
    %345 = vset.pattern.permute.xlu0 100
    %346 = vperm.xlu0 %345, %v51
    %v347 = vpop.permute.xlu0 %346
    %350 = vset.pattern.permute.xlu0 100
    %351 = vperm.xlu0 %350, %v52
    %v352 = vpop.permute.xlu0 %351
    %vm354 = vcmask 818176
    %v355 = vsel %vm354, %v46, 0
    %v357 = vsel %vm354, %v47, 0
    %v359 = vsel %vm354, %v48, 0
    %v361 = vsel %vm354, %v49, 0
    %v363 = vsel %vm354, %v50, 0
    %v365 = vsel %vm354, %v51, 0
    %v367 = vsel %vm354, %v52, 0
    %v370 = vsel %vm172, %v318, 0
    %372 = vmatprep.subr.mxu0 0.0
    %373 = vmatpush1.msra.mxu0 %v306
    %374 = vmatprep.subr.mxu0 0.0
    %375 = vmatpush1.msra.mxu0 %v307
    %376 = vmatprep.subr.mxu0 0.0
    %377 = vmatpush1.msra.mxu0 %v308
    %378 = vmatprep.subr.mxu0 0.0
    %379 = vmatpush1.msra.mxu0 %v309
    %380 = vmatprep.subr.mxu0 0.0
    %381 = vmatpush1.msra.mxu0 %v310
    %382 = vmatprep.subr.mxu0 0.0
    %383 = vmatpush1.msra.mxu0 %v311
    %384 = vmatprep.subr.mxu0 0.0
    %385 = vmatpush1.msra.mxu0 %v312
    %386 = vmatprep.subr.mxu0 0.0
    %387 = vmatpush1.msra.mxu0 %v313
    %388 = vmatprep.subr.mxu0 0.0
    %389 = vmatpush1.msra.mxu0 %v314
    %390 = vmatprep.subr.mxu0 0.0
    %391 = vmatpush1.msra.mxu0 %v315
    %392 = vmatprep.subr.mxu0 0.0
    %393 = vmatpush1.msra.mxu0 %v316
    %394 = vmatprep.subr.mxu0 0.0
    %395 = vmatpush1.msra.mxu0 %v317
    %396 = vmatprep.subr.mxu0 0.0
    %397 = vmatpush1.msra.mxu0 %v370
    %398 = vmatprep.subr.mxu0 0.0
    %399 = vmatpush1.msra.mxu0 0.0
    %400 = vmatprep.subr.mxu0 0.0
    %401 = vmatpush1.msra.mxu0 0.0
    %402 = vmatprep.subr.mxu0 0.0
    %403 = vmatpush1.msra.mxu0 0.0
    %404 = vmatprep.subr.mxu0 0.0
    %405 = vmatpush1.msra.mxu0 0.0
    %406 = vmatprep.subr.mxu0 0.0
    %407 = vmatpush1.msra.mxu0 0.0
    %408 = vmatprep.subr.mxu0 0.0
    %409 = vmatpush1.msra.mxu0 0.0
    %410 = vmatprep.subr.mxu0 0.0
    %411 = vmatpush1.msra.mxu0 0.0
    %412 = vmatprep.subr.mxu0 0.0
    %413 = vmatpush1.msra.mxu0 0.0
    %414 = vmatprep.subr.mxu0 0.0
    %415 = vmatpush1.msra.mxu0 0.0
    %416 = vmatprep.subr.mxu0 0.0
    %417 = vmatpush1.msra.mxu0 0.0
    %418 = vmatprep.subr.mxu0 0.0
    %419 = vmatpush1.msra.mxu0 0.0
    %420 = vmatprep.subr.mxu0 0.0
    %421 = vmatpush1.msra.mxu0 0.0
    %422 = vmatprep.subr.mxu0 0.0
    %423 = vmatpush1.msra.mxu0 0.0
    %424 = vmatprep.subr.mxu0 0.0
    %425 = vmatpush1.msra.mxu0 0.0
    %426 = vmatprep.subr.mxu0 0.0
    %427 = vmatpush1.msra.mxu0 0.0
    %428 = vmatprep.subr.mxu0 0.0
    %429 = vmatpush1.msra.mxu0 0.0
    %430 = vmatprep.subr.mxu0 0.0
    %431 = vmatpush1.msra.mxu0 0.0
    %432 = vmatprep.subr.mxu0 0.0
    %433 = vmatpush1.msra.mxu0 0.0
    %434 = vmatprep.subr.mxu0 0.0
    %435 = vmatpush1.msra.mxu0 0.0
    %436 = vmatprep.mubr.f32.mxu0 0.0
    %437 = vmatmul.mubr.f32.gmra.mrb[0].mxu0 %v355
    %v438 = vpop.f32.mrb[0].mxu0
    %v439 = vadd.f32 %v322, %v438
    %v440 = vpop.f32.mrb[0].mxu0
    %441 = vmatprep.mubr.f32.mxu0 0.0
    %442 = vmatmul.mubr.f32.gmra.mrb[0].mxu0 %v357
    %v443 = vpop.f32.mrb[0].mxu0
    %v444 = vadd.f32 %v327, %v443
    %v445 = vpop.f32.mrb[0].mxu0
    %446 = vmatprep.mubr.f32.mxu0 0.0
    %447 = vmatmul.mubr.f32.gmra.mrb[0].mxu0 %v359
    %v448 = vpop.f32.mrb[0].mxu0
    %v449 = vadd.f32 %v332, %v448
    %v450 = vpop.f32.mrb[0].mxu0
    %451 = vmatprep.mubr.f32.mxu0 0.0
    %452 = vmatmul.mubr.f32.gmra.mrb[0].mxu0 %v361
    %v453 = vpop.f32.mrb[0].mxu0
    %v454 = vadd.f32 %v337, %v453
    %v455 = vpop.f32.mrb[0].mxu0
    %456 = vmatprep.mubr.f32.mxu0 0.0
    %457 = vmatmul.mubr.f32.gmra.mrb[0].mxu0 %v363
    %v458 = vpop.f32.mrb[0].mxu0
    %v459 = vadd.f32 %v342, %v458
    %v460 = vpop.f32.mrb[0].mxu0
    %461 = vmatprep.mubr.f32.mxu0 0.0
    %462 = vmatmul.mubr.f32.gmra.mrb[0].mxu0 %v365
    %v463 = vpop.f32.mrb[0].mxu0
    %v464 = vadd.f32 %v347, %v463
    %v465 = vpop.f32.mrb[0].mxu0
    %466 = vmatprep.mubr.f32.mxu0 0.0
    %467 = vmatmul.mubr.f32.gmra.mrb[0].mxu0 %v367
    %v468 = vpop.f32.mrb[0].mxu0
    %v469 = vadd.f32 %v352, %v468
    %v470 = vpop.f32.mrb[0].mxu0
    %471 = vdwg.mxu0
    %v472 = vtanh.pop %v439
    %v473 = vtanh.pop %v444
    %v474 = vtanh.pop %v449
    %v475 = vtanh.pop %v454
    %v476 = vtanh.pop %v459
    %v477 = vtanh.pop %v464
    %v478 = vtanh.pop %v469
    %480 = vset.pattern.permute.xlu0 50
    %481 = vperm.xlu0 %480, %v53
    %v482 = vpop.permute.xlu0 %481
    %485 = vset.pattern.permute.xlu0 50
    %486 = vperm.xlu0 %485, %v54
    %v487 = vpop.permute.xlu0 %486
    %vm489 = vcmask 408576
    %v490 = vsel %vm489, %v53, 0
    %v492 = vsel %vm489, %v54, 0
    %vm494 = vcmask 1041408
    %v496 = vsel %vm494, %v478, 0
    %498 = vmatprep.subr.mxu0 0.0
    %499 = vmatpush1.msra.mxu0 %v472
    %500 = vmatprep.subr.mxu0 0.0
    %501 = vmatpush1.msra.mxu0 %v473
    %502 = vmatprep.subr.mxu0 0.0
    %503 = vmatpush1.msra.mxu0 %v474
    %504 = vmatprep.subr.mxu0 0.0
    %505 = vmatpush1.msra.mxu0 %v475
    %506 = vmatprep.subr.mxu0 0.0
    %507 = vmatpush1.msra.mxu0 %v476
    %508 = vmatprep.subr.mxu0 0.0
    %509 = vmatpush1.msra.mxu0 %v477
    %510 = vmatprep.subr.mxu0 0.0
    %511 = vmatpush1.msra.mxu0 %v496
    %512 = vmatprep.subr.mxu0 0.0
    %513 = vmatpush1.msra.mxu0 0.0
    %514 = vmatprep.subr.mxu0 0.0
    %515 = vmatpush1.msra.mxu0 0.0
    %516 = vmatprep.subr.mxu0 0.0
    %517 = vmatpush1.msra.mxu0 0.0
    %518 = vmatprep.subr.mxu0 0.0
    %519 = vmatpush1.msra.mxu0 0.0
    %520 = vmatprep.subr.mxu0 0.0
    %521 = vmatpush1.msra.mxu0 0.0
    %522 = vmatprep.subr.mxu0 0.0
    %523 = vmatpush1.msra.mxu0 0.0
    %524 = vmatprep.subr.mxu0 0.0
    %525 = vmatpush1.msra.mxu0 0.0
    %526 = vmatprep.subr.mxu0 0.0
    %527 = vmatpush1.msra.mxu0 0.0
    %528 = vmatprep.subr.mxu0 0.0
    %529 = vmatpush1.msra.mxu0 0.0
    %530 = vmatprep.subr.mxu0 0.0
    %531 = vmatpush1.msra.mxu0 0.0
    %532 = vmatprep.subr.mxu0 0.0
    %533 = vmatpush1.msra.mxu0 0.0
    %534 = vmatprep.subr.mxu0 0.0
    %535 = vmatpush1.msra.mxu0 0.0
    %536 = vmatprep.subr.mxu0 0.0
    %537 = vmatpush1.msra.mxu0 0.0
    %538 = vmatprep.subr.mxu0 0.0
    %539 = vmatpush1.msra.mxu0 0.0
    %540 = vmatprep.subr.mxu0 0.0
    %541 = vmatpush1.msra.mxu0 0.0
    %542 = vmatprep.subr.mxu0 0.0
    %543 = vmatpush1.msra.mxu0 0.0
    %544 = vmatprep.subr.mxu0 0.0
    %545 = vmatpush1.msra.mxu0 0.0
    %546 = vmatprep.subr.mxu0 0.0
    %547 = vmatpush1.msra.mxu0 0.0
    %548 = vmatprep.subr.mxu0 0.0
    %549 = vmatpush1.msra.mxu0 0.0
    %550 = vmatprep.subr.mxu0 0.0
    %551 = vmatpush1.msra.mxu0 0.0
    %552 = vmatprep.subr.mxu0 0.0
    %553 = vmatpush1.msra.mxu0 0.0
    %554 = vmatprep.subr.mxu0 0.0
    %555 = vmatpush1.msra.mxu0 0.0
    %556 = vmatprep.subr.mxu0 0.0
    %557 = vmatpush1.msra.mxu0 0.0
    %558 = vmatprep.subr.mxu0 0.0
    %559 = vmatpush1.msra.mxu0 0.0
    %560 = vmatprep.subr.mxu0 0.0
    %561 = vmatpush1.msra.mxu0 0.0
    %562 = vmatprep.mubr.f32.mxu0 0.0
    %563 = vmatmul.mubr.f32.gmra.mrb[0].mxu0 %v490
    %v564 = vpop.f32.mrb[0].mxu0
    %v565 = vadd.f32 %v482, %v564
    %v566 = vpop.f32.mrb[0].mxu0
    %567 = vmatprep.mubr.f32.mxu0 0.0
    %568 = vmatmul.mubr.f32.gmra.mrb[0].mxu0 %v492
    %v569 = vpop.f32.mrb[0].mxu0
    %v570 = vadd.f32 %v487, %v569
    %v571 = vpop.f32.mrb[0].mxu0
    %572 = vdwg.mxu0
    %v573 = vtanh.pop %v565
    %v574 = vtanh.pop %v570
    %576 = vset.pattern.permute.xlu0 10
    %577 = vperm.xlu0 %576, %v55
    %v578 = vpop.permute.xlu0 %577
    %vm580 = vcmask 80896
    %v581 = vsel %vm580, %v55, 0
    %v584 = vsel %vm494, %v574, 0
    %586 = vmatprep.subr.mxu0 0.0
    %587 = vmatpush1.msra.mxu0 %v573
    %588 = vmatprep.subr.mxu0 0.0
    %589 = vmatpush1.msra.mxu0 %v584
    %590 = vmatprep.subr.mxu0 0.0
    %591 = vmatpush1.msra.mxu0 0.0
    %592 = vmatprep.subr.mxu0 0.0
    %593 = vmatpush1.msra.mxu0 0.0
    %594 = vmatprep.subr.mxu0 0.0
    %595 = vmatpush1.msra.mxu0 0.0
    %596 = vmatprep.subr.mxu0 0.0
    %597 = vmatpush1.msra.mxu0 0.0
    %598 = vmatprep.subr.mxu0 0.0
    %599 = vmatpush1.msra.mxu0 0.0
    %600 = vmatprep.subr.mxu0 0.0
    %601 = vmatpush1.msra.mxu0 0.0
    %602 = vmatprep.subr.mxu0 0.0
    %603 = vmatpush1.msra.mxu0 0.0
    %604 = vmatprep.subr.mxu0 0.0
    %605 = vmatpush1.msra.mxu0 0.0
    %606 = vmatprep.subr.mxu0 0.0
    %607 = vmatpush1.msra.mxu0 0.0
    %608 = vmatprep.subr.mxu0 0.0
    %609 = vmatpush1.msra.mxu0 0.0
    %610 = vmatprep.subr.mxu0 0.0
    %611 = vmatpush1.msra.mxu0 0.0
    %612 = vmatprep.subr.mxu0 0.0
    %613 = vmatpush1.msra.mxu0 0.0
    %614 = vmatprep.subr.mxu0 0.0
    %615 = vmatpush1.msra.mxu0 0.0
    %616 = vmatprep.subr.mxu0 0.0
    %617 = vmatpush1.msra.mxu0 0.0
    %618 = vmatprep.subr.mxu0 0.0
    %619 = vmatpush1.msra.mxu0 0.0
    %620 = vmatprep.subr.mxu0 0.0
    %621 = vmatpush1.msra.mxu0 0.0
    %622 = vmatprep.subr.mxu0 0.0
    %623 = vmatpush1.msra.mxu0 0.0
    %624 = vmatprep.subr.mxu0 0.0
    %625 = vmatpush1.msra.mxu0 0.0
    %626 = vmatprep.subr.mxu0 0.0
    %627 = vmatpush1.msra.mxu0 0.0
    %628 = vmatprep.subr.mxu0 0.0
    %629 = vmatpush1.msra.mxu0 0.0
    %630 = vmatprep.subr.mxu0 0.0
    %631 = vmatpush1.msra.mxu0 0.0
    %632 = vmatprep.subr.mxu0 0.0
    %633 = vmatpush1.msra.mxu0 0.0
    %634 = vmatprep.subr.mxu0 0.0
    %635 = vmatpush1.msra.mxu0 0.0
    %636 = vmatprep.subr.mxu0 0.0
    %637 = vmatpush1.msra.mxu0 0.0
    %638 = vmatprep.subr.mxu0 0.0
    %639 = vmatpush1.msra.mxu0 0.0
    %640 = vmatprep.subr.mxu0 0.0
    %641 = vmatpush1.msra.mxu0 0.0
    %642 = vmatprep.subr.mxu0 0.0
    %643 = vmatpush1.msra.mxu0 0.0
    %644 = vmatprep.subr.mxu0 0.0
    %645 = vmatpush1.msra.mxu0 0.0
    %646 = vmatprep.subr.mxu0 0.0
    %647 = vmatpush1.msra.mxu0 0.0
    %648 = vmatprep.subr.mxu0 0.0
    %649 = vmatpush1.msra.mxu0 0.0
    %650 = vmatprep.mubr.f32.mxu0 0.0
    %651 = vmatmul.mubr.f32.gmra.mrb[0].mxu0 %v581
    %v652 = vpop.f32.mrb[0].mxu0
    %v653 = vadd.f32 %v578, %v652
    %v654 = vpop.f32.mrb[0].mxu0
    %655 = vdwg.mxu0
    %v656 = vtanh.pop %v653
    %658 = vset.pattern.permute.xlu0 3
    %659 = vperm.xlu0 %658, %v56
    %v660 = vpop.permute.xlu0 %659
    %663 = vset.pattern.permute.xlu0 3
    %664 = vperm.xlu0 %663, %v57
    %v665 = vpop.permute.xlu0 %664
    %vm667 = vcmask 23552
    %v668 = vsel %vm667, %v56, 0
    %v670 = vsel %vm667, %v57, 0
    %vm672 = vcmask 1042432
    %v674 = vsel %vm672, %v656, 0
    %676 = vmatprep.subr.mxu0 0.0
    %677 = vmatpush1.msra.mxu0 %v674
    %678 = vmatprep.subr.mxu0 0.0
    %679 = vmatpush1.msra.mxu0 0.0
    %680 = vmatprep.subr.mxu0 0.0
    %681 = vmatpush1.msra.mxu0 0.0
    %682 = vmatprep.subr.mxu0 0.0
    %683 = vmatpush1.msra.mxu0 0.0
    %684 = vmatprep.subr.mxu0 0.0
    %685 = vmatpush1.msra.mxu0 0.0
    %686 = vmatprep.subr.mxu0 0.0
    %687 = vmatpush1.msra.mxu0 0.0
    %688 = vmatprep.subr.mxu0 0.0
    %689 = vmatpush1.msra.mxu0 0.0
    %690 = vmatprep.subr.mxu0 0.0
    %691 = vmatpush1.msra.mxu0 0.0
    %692 = vmatprep.subr.mxu0 0.0
    %693 = vmatpush1.msra.mxu0 0.0
    %694 = vmatprep.subr.mxu0 0.0
    %695 = vmatpush1.msra.mxu0 0.0
    %696 = vmatprep.subr.mxu0 0.0
    %697 = vmatpush1.msra.mxu0 0.0
    %698 = vmatprep.subr.mxu0 0.0
    %699 = vmatpush1.msra.mxu0 0.0
    %700 = vmatprep.subr.mxu0 0.0
    %701 = vmatpush1.msra.mxu0 0.0
    %702 = vmatprep.subr.mxu0 0.0
    %703 = vmatpush1.msra.mxu0 0.0
    %704 = vmatprep.subr.mxu0 0.0
    %705 = vmatpush1.msra.mxu0 0.0
    %706 = vmatprep.subr.mxu0 0.0
    %707 = vmatpush1.msra.mxu0 0.0
    %708 = vmatprep.subr.mxu0 0.0
    %709 = vmatpush1.msra.mxu0 0.0
    %710 = vmatprep.subr.mxu0 0.0
    %711 = vmatpush1.msra.mxu0 0.0
    %712 = vmatprep.subr.mxu0 0.0
    %713 = vmatpush1.msra.mxu0 0.0
    %714 = vmatprep.subr.mxu0 0.0
    %715 = vmatpush1.msra.mxu0 0.0
    %716 = vmatprep.subr.mxu0 0.0
    %717 = vmatpush1.msra.mxu0 0.0
    %718 = vmatprep.subr.mxu0 0.0
    %719 = vmatpush1.msra.mxu0 0.0
    %720 = vmatprep.subr.mxu0 0.0
    %721 = vmatpush1.msra.mxu0 0.0
    %722 = vmatprep.subr.mxu0 0.0
    %723 = vmatpush1.msra.mxu0 0.0
    %724 = vmatprep.subr.mxu0 0.0
    %725 = vmatpush1.msra.mxu0 0.0
    %726 = vmatprep.subr.mxu0 0.0
    %727 = vmatpush1.msra.mxu0 0.0
    %728 = vmatprep.subr.mxu0 0.0
    %729 = vmatpush1.msra.mxu0 0.0
    %730 = vmatprep.subr.mxu0 0.0
    %731 = vmatpush1.msra.mxu0 0.0
    %732 = vmatprep.subr.mxu0 0.0
    %733 = vmatpush1.msra.mxu0 0.0
    %734 = vmatprep.subr.mxu0 0.0
    %735 = vmatpush1.msra.mxu0 0.0
    %736 = vmatprep.subr.mxu0 0.0
    %737 = vmatpush1.msra.mxu0 0.0
    %738 = vmatprep.subr.mxu0 0.0
    %739 = vmatpush1.msra.mxu0 0.0
    %740 = vmatprep.mubr.f32.mxu0 0.0
    %741 = vmatmul.mubr.f32.gmra.mrb[0].mxu0 %v668
    %v742 = vpop.f32.mrb[0].mxu0
    %v743 = vadd.f32 %v660, %v742
    %v744 = vpop.f32.mrb[0].mxu0
    %745 = vmatprep.mubr.f32.mxu0 0.0
    %746 = vmatmul.mubr.f32.gmra.mrb[0].mxu0 %v670
    %v747 = vpop.f32.mrb[0].mxu0
    %v748 = vadd.f32 %v665, %v747
    %v749 = vpop.f32.mrb[0].mxu0
    %750 = vdwg.mxu0
    %v751 = vtanh.pop %v743
    %v752 = vtanh.pop %v748
    %754 = vset.pattern.permute.xlu0 10
    %755 = vperm.xlu0 %754, %v58
    %v756 = vpop.permute.xlu0 %755
    %759 = vset.pattern.permute.xlu0 10
    %760 = vperm.xlu0 %759, %v59
    %v761 = vpop.permute.xlu0 %760
    %764 = vset.pattern.permute.xlu0 10
    %765 = vperm.xlu0 %764, %v60
    %v766 = vpop.permute.xlu0 %765
    %769 = vset.pattern.permute.xlu0 10
    %770 = vperm.xlu0 %769, %v61
    %v771 = vpop.permute.xlu0 %770
    %774 = vset.pattern.permute.xlu0 10
    %775 = vperm.xlu0 %774, %v62
    %v776 = vpop.permute.xlu0 %775
    %779 = vset.pattern.permute.xlu0 10
    %780 = vperm.xlu0 %779, %v63
    %v781 = vpop.permute.xlu0 %780
    %784 = vset.pattern.permute.xlu0 10
    %785 = vperm.xlu0 %784, %v64
    %v786 = vpop.permute.xlu0 %785
    %v788 = vsel %vm580, %v58, 0
    %v790 = vsel %vm580, %v59, 0
    %v792 = vsel %vm580, %v60, 0
    %v794 = vsel %vm580, %v61, 0
    %v796 = vsel %vm580, %v62, 0
    %v798 = vsel %vm580, %v63, 0
    %v800 = vsel %vm580, %v64, 0
    %v803 = vsel %vm494, %v752, 0
    %805 = vmatprep.subr.mxu0 0.0
    %806 = vmatpush1.msra.mxu0 %v751
    %807 = vmatprep.subr.mxu0 0.0
    %808 = vmatpush1.msra.mxu0 %v803
    %809 = vmatprep.subr.mxu0 0.0
    %810 = vmatpush1.msra.mxu0 0.0
    %811 = vmatprep.subr.mxu0 0.0
    %812 = vmatpush1.msra.mxu0 0.0
    %813 = vmatprep.subr.mxu0 0.0
    %814 = vmatpush1.msra.mxu0 0.0
    %815 = vmatprep.subr.mxu0 0.0
    %816 = vmatpush1.msra.mxu0 0.0
    %817 = vmatprep.subr.mxu0 0.0
    %818 = vmatpush1.msra.mxu0 0.0
    %819 = vmatprep.subr.mxu0 0.0
    %820 = vmatpush1.msra.mxu0 0.0
    %821 = vmatprep.subr.mxu0 0.0
    %822 = vmatpush1.msra.mxu0 0.0
    %823 = vmatprep.subr.mxu0 0.0
    %824 = vmatpush1.msra.mxu0 0.0
    %825 = vmatprep.subr.mxu0 0.0
    %826 = vmatpush1.msra.mxu0 0.0
    %827 = vmatprep.subr.mxu0 0.0
    %828 = vmatpush1.msra.mxu0 0.0
    %829 = vmatprep.subr.mxu0 0.0
    %830 = vmatpush1.msra.mxu0 0.0
    %831 = vmatprep.subr.mxu0 0.0
    %832 = vmatpush1.msra.mxu0 0.0
    %833 = vmatprep.subr.mxu0 0.0
    %834 = vmatpush1.msra.mxu0 0.0
    %835 = vmatprep.subr.mxu0 0.0
    %836 = vmatpush1.msra.mxu0 0.0
    %837 = vmatprep.subr.mxu0 0.0
    %838 = vmatpush1.msra.mxu0 0.0
    %839 = vmatprep.subr.mxu0 0.0
    %840 = vmatpush1.msra.mxu0 0.0
    %841 = vmatprep.subr.mxu0 0.0
    %842 = vmatpush1.msra.mxu0 0.0
    %843 = vmatprep.subr.mxu0 0.0
    %844 = vmatpush1.msra.mxu0 0.0
    %845 = vmatprep.subr.mxu0 0.0
    %846 = vmatpush1.msra.mxu0 0.0
    %847 = vmatprep.subr.mxu0 0.0
    %848 = vmatpush1.msra.mxu0 0.0
    %849 = vmatprep.subr.mxu0 0.0
    %850 = vmatpush1.msra.mxu0 0.0
    %851 = vmatprep.subr.mxu0 0.0
    %852 = vmatpush1.msra.mxu0 0.0
    %853 = vmatprep.subr.mxu0 0.0
    %854 = vmatpush1.msra.mxu0 0.0
    %855 = vmatprep.subr.mxu0 0.0
    %856 = vmatpush1.msra.mxu0 0.0
    %857 = vmatprep.subr.mxu0 0.0
    %858 = vmatpush1.msra.mxu0 0.0
    %859 = vmatprep.subr.mxu0 0.0
    %860 = vmatpush1.msra.mxu0 0.0
    %861 = vmatprep.subr.mxu0 0.0
    %862 = vmatpush1.msra.mxu0 0.0
    %863 = vmatprep.subr.mxu0 0.0
    %864 = vmatpush1.msra.mxu0 0.0
    %865 = vmatprep.subr.mxu0 0.0
    %866 = vmatpush1.msra.mxu0 0.0
    %867 = vmatprep.subr.mxu0 0.0
    %868 = vmatpush1.msra.mxu0 0.0
    %869 = vmatprep.mubr.f32.mxu0 0.0
    %870 = vmatmul.mubr.f32.gmra.mrb[0].mxu0 %v788
    %v871 = vpop.f32.mrb[0].mxu0
    %v872 = vadd.f32 %v756, %v871
    %v873 = vpop.f32.mrb[0].mxu0
    %874 = vmatprep.mubr.f32.mxu0 0.0
    %875 = vmatmul.mubr.f32.gmra.mrb[0].mxu0 %v790
    %v876 = vpop.f32.mrb[0].mxu0
    %v877 = vadd.f32 %v761, %v876
    %v878 = vpop.f32.mrb[0].mxu0
    %879 = vmatprep.mubr.f32.mxu0 0.0
    %880 = vmatmul.mubr.f32.gmra.mrb[0].mxu0 %v792
    %v881 = vpop.f32.mrb[0].mxu0
    %v882 = vadd.f32 %v766, %v881
    %v883 = vpop.f32.mrb[0].mxu0
    %884 = vmatprep.mubr.f32.mxu0 0.0
    %885 = vmatmul.mubr.f32.gmra.mrb[0].mxu0 %v794
    %v886 = vpop.f32.mrb[0].mxu0
    %v887 = vadd.f32 %v771, %v886
    %v888 = vpop.f32.mrb[0].mxu0
    %889 = vmatprep.mubr.f32.mxu0 0.0
    %890 = vmatmul.mubr.f32.gmra.mrb[0].mxu0 %v796
    %v891 = vpop.f32.mrb[0].mxu0
    %v892 = vadd.f32 %v776, %v891
    %v893 = vpop.f32.mrb[0].mxu0
    %894 = vmatprep.mubr.f32.mxu0 0.0
    %895 = vmatmul.mubr.f32.gmra.mrb[0].mxu0 %v798
    %v896 = vpop.f32.mrb[0].mxu0
    %v897 = vadd.f32 %v781, %v896
    %v898 = vpop.f32.mrb[0].mxu0
    %899 = vmatprep.mubr.f32.mxu0 0.0
    %900 = vmatmul.mubr.f32.gmra.mrb[0].mxu0 %v800
    %v901 = vpop.f32.mrb[0].mxu0
    %v902 = vadd.f32 %v786, %v901
    %v903 = vpop.f32.mrb[0].mxu0
    %904 = vdwg.mxu0
    %v905 = vtanh.pop %v872
    %v906 = vtanh.pop %v877
    %v907 = vtanh.pop %v882
    %v908 = vtanh.pop %v887
    %v909 = vtanh.pop %v892
    %v910 = vtanh.pop %v897
    %v911 = vtanh.pop %v902
    %913 = vset.pattern.permute.xlu0 50
    %914 = vperm.xlu0 %913, %v65
    %v915 = vpop.permute.xlu0 %914
    %918 = vset.pattern.permute.xlu0 50
    %919 = vperm.xlu0 %918, %v66
    %v920 = vpop.permute.xlu0 %919
    %923 = vset.pattern.permute.xlu0 50
    %924 = vperm.xlu0 %923, %v67
    %v925 = vpop.permute.xlu0 %924
    %928 = vset.pattern.permute.xlu0 50
    %929 = vperm.xlu0 %928, %v68
    %v930 = vpop.permute.xlu0 %929
    %933 = vset.pattern.permute.xlu0 50
    %934 = vperm.xlu0 %933, %v69
    %v935 = vpop.permute.xlu0 %934
    %938 = vset.pattern.permute.xlu0 50
    %939 = vperm.xlu0 %938, %v70
    %v940 = vpop.permute.xlu0 %939
    %943 = vset.pattern.permute.xlu0 50
    %944 = vperm.xlu0 %943, %v71
    %v945 = vpop.permute.xlu0 %944
    %948 = vset.pattern.permute.xlu0 50
    %949 = vperm.xlu0 %948, %v72
    %v950 = vpop.permute.xlu0 %949
    %953 = vset.pattern.permute.xlu0 50
    %954 = vperm.xlu0 %953, %v73
    %v955 = vpop.permute.xlu0 %954
    %958 = vset.pattern.permute.xlu0 50
    %959 = vperm.xlu0 %958, %v74
    %v960 = vpop.permute.xlu0 %959
    %963 = vset.pattern.permute.xlu0 50
    %964 = vperm.xlu0 %963, %v75
    %v965 = vpop.permute.xlu0 %964
    %968 = vset.pattern.permute.xlu0 50
    %969 = vperm.xlu0 %968, %v76
    %v970 = vpop.permute.xlu0 %969
    %973 = vset.pattern.permute.xlu0 50
    %974 = vperm.xlu0 %973, %v77
    %v975 = vpop.permute.xlu0 %974
    %v977 = vsel %vm489, %v65, 0
    %v979 = vsel %vm489, %v66, 0
    %v981 = vsel %vm489, %v67, 0
    %v983 = vsel %vm489, %v68, 0
    %v985 = vsel %vm489, %v69, 0
    %v987 = vsel %vm489, %v70, 0
    %v989 = vsel %vm489, %v71, 0
    %v991 = vsel %vm489, %v72, 0
    %v993 = vsel %vm489, %v73, 0
    %v995 = vsel %vm489, %v74, 0
    %v997 = vsel %vm489, %v75, 0
    %v999 = vsel %vm489, %v76, 0
    %v1001 = vsel %vm489, %v77, 0
    %v1004 = vsel %vm494, %v911, 0
    %1006 = vmatprep.subr.mxu0 0.0
    %1007 = vmatpush1.msra.mxu0 %v905
    %1008 = vmatprep.subr.mxu0 0.0
    %1009 = vmatpush1.msra.mxu0 %v906
    %1010 = vmatprep.subr.mxu0 0.0
    %1011 = vmatpush1.msra.mxu0 %v907
    %1012 = vmatprep.subr.mxu0 0.0
    %1013 = vmatpush1.msra.mxu0 %v908
    %1014 = vmatprep.subr.mxu0 0.0
    %1015 = vmatpush1.msra.mxu0 %v909
    %1016 = vmatprep.subr.mxu0 0.0
    %1017 = vmatpush1.msra.mxu0 %v910
    %1018 = vmatprep.subr.mxu0 0.0
    %1019 = vmatpush1.msra.mxu0 %v1004
    %1020 = vmatprep.subr.mxu0 0.0
    %1021 = vmatpush1.msra.mxu0 0.0
    %1022 = vmatprep.subr.mxu0 0.0
    %1023 = vmatpush1.msra.mxu0 0.0
    %1024 = vmatprep.subr.mxu0 0.0
    %1025 = vmatpush1.msra.mxu0 0.0
    %1026 = vmatprep.subr.mxu0 0.0
    %1027 = vmatpush1.msra.mxu0 0.0
    %1028 = vmatprep.subr.mxu0 0.0
    %1029 = vmatpush1.msra.mxu0 0.0
    %1030 = vmatprep.subr.mxu0 0.0
    %1031 = vmatpush1.msra.mxu0 0.0
    %1032 = vmatprep.subr.mxu0 0.0
    %1033 = vmatpush1.msra.mxu0 0.0
    %1034 = vmatprep.subr.mxu0 0.0
    %1035 = vmatpush1.msra.mxu0 0.0
    %1036 = vmatprep.subr.mxu0 0.0
    %1037 = vmatpush1.msra.mxu0 0.0
    %1038 = vmatprep.subr.mxu0 0.0
    %1039 = vmatpush1.msra.mxu0 0.0
    %1040 = vmatprep.subr.mxu0 0.0
    %1041 = vmatpush1.msra.mxu0 0.0
    %1042 = vmatprep.subr.mxu0 0.0
    %1043 = vmatpush1.msra.mxu0 0.0
    %1044 = vmatprep.subr.mxu0 0.0
    %1045 = vmatpush1.msra.mxu0 0.0
    %1046 = vmatprep.subr.mxu0 0.0
    %1047 = vmatpush1.msra.mxu0 0.0
    %1048 = vmatprep.subr.mxu0 0.0
    %1049 = vmatpush1.msra.mxu0 0.0
    %1050 = vmatprep.subr.mxu0 0.0
    %1051 = vmatpush1.msra.mxu0 0.0
    %1052 = vmatprep.subr.mxu0 0.0
    %1053 = vmatpush1.msra.mxu0 0.0
    %1054 = vmatprep.subr.mxu0 0.0
    %1055 = vmatpush1.msra.mxu0 0.0
    %1056 = vmatprep.subr.mxu0 0.0
    %1057 = vmatpush1.msra.mxu0 0.0
    %1058 = vmatprep.subr.mxu0 0.0
    %1059 = vmatpush1.msra.mxu0 0.0
    %1060 = vmatprep.subr.mxu0 0.0
    %1061 = vmatpush1.msra.mxu0 0.0
    %1062 = vmatprep.subr.mxu0 0.0
    %1063 = vmatpush1.msra.mxu0 0.0
    %1064 = vmatprep.subr.mxu0 0.0
    %1065 = vmatpush1.msra.mxu0 0.0
    %1066 = vmatprep.subr.mxu0 0.0
    %1067 = vmatpush1.msra.mxu0 0.0
    %1068 = vmatprep.subr.mxu0 0.0
    %1069 = vmatpush1.msra.mxu0 0.0
    %1070 = vmatprep.mubr.f32.mxu0 0.0
    %1071 = vmatmul.mubr.f32.gmra.mrb[0].mxu0 %v977
    %v1072 = vpop.f32.mrb[0].mxu0
    %v1073 = vadd.f32 %v915, %v1072
    %v1074 = vpop.f32.mrb[0].mxu0
    %1075 = vmatprep.mubr.f32.mxu0 0.0
    %1076 = vmatmul.mubr.f32.gmra.mrb[0].mxu0 %v979
    %v1077 = vpop.f32.mrb[0].mxu0
    %v1078 = vadd.f32 %v920, %v1077
    %v1079 = vpop.f32.mrb[0].mxu0
    %1080 = vmatprep.mubr.f32.mxu0 0.0
    %1081 = vmatmul.mubr.f32.gmra.mrb[0].mxu0 %v981
    %v1082 = vpop.f32.mrb[0].mxu0
    %v1083 = vadd.f32 %v925, %v1082
    %v1084 = vpop.f32.mrb[0].mxu0
    %1085 = vmatprep.mubr.f32.mxu0 0.0
    %1086 = vmatmul.mubr.f32.gmra.mrb[0].mxu0 %v983
    %v1087 = vpop.f32.mrb[0].mxu0
    %v1088 = vadd.f32 %v930, %v1087
    %v1089 = vpop.f32.mrb[0].mxu0
    %1090 = vmatprep.mubr.f32.mxu0 0.0
    %1091 = vmatmul.mubr.f32.gmra.mrb[0].mxu0 %v985
    %v1092 = vpop.f32.mrb[0].mxu0
    %v1093 = vadd.f32 %v935, %v1092
    %v1094 = vpop.f32.mrb[0].mxu0
    %1095 = vmatprep.mubr.f32.mxu0 0.0
    %1096 = vmatmul.mubr.f32.gmra.mrb[0].mxu0 %v987
    %v1097 = vpop.f32.mrb[0].mxu0
    %v1098 = vadd.f32 %v940, %v1097
    %v1099 = vpop.f32.mrb[0].mxu0
    %1100 = vmatprep.mubr.f32.mxu0 0.0
    %1101 = vmatmul.mubr.f32.gmra.mrb[0].mxu0 %v989
    %v1102 = vpop.f32.mrb[0].mxu0
    %v1103 = vadd.f32 %v945, %v1102
    %v1104 = vpop.f32.mrb[0].mxu0
    %1105 = vmatprep.mubr.f32.mxu0 0.0
    %1106 = vmatmul.mubr.f32.gmra.mrb[0].mxu0 %v991
    %v1107 = vpop.f32.mrb[0].mxu0
    %v1108 = vadd.f32 %v950, %v1107
    %v1109 = vpop.f32.mrb[0].mxu0
    %1110 = vmatprep.mubr.f32.mxu0 0.0
    %1111 = vmatmul.mubr.f32.gmra.mrb[0].mxu0 %v993
    %v1112 = vpop.f32.mrb[0].mxu0
    %v1113 = vadd.f32 %v955, %v1112
    %v1114 = vpop.f32.mrb[0].mxu0
    %1115 = vmatprep.mubr.f32.mxu0 0.0
    %1116 = vmatmul.mubr.f32.gmra.mrb[0].mxu0 %v995
    %v1117 = vpop.f32.mrb[0].mxu0
    %v1118 = vadd.f32 %v960, %v1117
    %v1119 = vpop.f32.mrb[0].mxu0
    %1120 = vmatprep.mubr.f32.mxu0 0.0
    %1121 = vmatmul.mubr.f32.gmra.mrb[0].mxu0 %v997
    %v1122 = vpop.f32.mrb[0].mxu0
    %v1123 = vadd.f32 %v965, %v1122
    %v1124 = vpop.f32.mrb[0].mxu0
    %1125 = vmatprep.mubr.f32.mxu0 0.0
    %1126 = vmatmul.mubr.f32.gmra.mrb[0].mxu0 %v999
    %v1127 = vpop.f32.mrb[0].mxu0
    %v1128 = vadd.f32 %v970, %v1127
    %v1129 = vpop.f32.mrb[0].mxu0
    %1130 = vmatprep.mubr.f32.mxu0 0.0
    %1131 = vmatmul.mubr.f32.gmra.mrb[0].mxu0 %v1001
    %v1132 = vpop.f32.mrb[0].mxu0
    %v1133 = vadd.f32 %v975, %v1132
    %v1134 = vpop.f32.mrb[0].mxu0
    %1135 = vdwg.mxu0
    %v1136 = vtanh.pop %v1073
    %v1137 = vtanh.pop %v1078
    %v1138 = vtanh.pop %v1083
    %v1139 = vtanh.pop %v1088
    %v1140 = vtanh.pop %v1093
    %v1141 = vtanh.pop %v1098
    %v1142 = vtanh.pop %v1103
    %v1143 = vtanh.pop %v1108
    %v1144 = vtanh.pop %v1113
    %v1145 = vtanh.pop %v1118
    %v1146 = vtanh.pop %v1123
    %v1147 = vtanh.pop %v1128
    %v1148 = vtanh.pop %v1133
    %1150 = vset.pattern.permute.xlu0 100
    %1151 = vperm.xlu0 %1150, %v78
    %v1152 = vpop.permute.xlu0 %1151
    %v1154 = vsel %vm354, %v78, 0
    %v1157 = vsel %vm172, %v1148, 0
    %1159 = vmatprep.subr.mxu0 0.0
    %1160 = vmatpush1.msra.mxu0 %v1136
    %1161 = vmatprep.subr.mxu0 0.0
    %1162 = vmatpush1.msra.mxu0 %v1137
    %1163 = vmatprep.subr.mxu0 0.0
    %1164 = vmatpush1.msra.mxu0 %v1138
    %1165 = vmatprep.subr.mxu0 0.0
    %1166 = vmatpush1.msra.mxu0 %v1139
    %1167 = vmatprep.subr.mxu0 0.0
    %1168 = vmatpush1.msra.mxu0 %v1140
    %1169 = vmatprep.subr.mxu0 0.0
    %1170 = vmatpush1.msra.mxu0 %v1141
    %1171 = vmatprep.subr.mxu0 0.0
    %1172 = vmatpush1.msra.mxu0 %v1142
    %1173 = vmatprep.subr.mxu0 0.0
    %1174 = vmatpush1.msra.mxu0 %v1143
    %1175 = vmatprep.subr.mxu0 0.0
    %1176 = vmatpush1.msra.mxu0 %v1144
    %1177 = vmatprep.subr.mxu0 0.0
    %1178 = vmatpush1.msra.mxu0 %v1145
    %1179 = vmatprep.subr.mxu0 0.0
    %1180 = vmatpush1.msra.mxu0 %v1146
    %1181 = vmatprep.subr.mxu0 0.0
    %1182 = vmatpush1.msra.mxu0 %v1147
    %1183 = vmatprep.subr.mxu0 0.0
    %1184 = vmatpush1.msra.mxu0 %v1157
    %1185 = vmatprep.subr.mxu0 0.0
    %1186 = vmatpush1.msra.mxu0 0.0
    %1187 = vmatprep.subr.mxu0 0.0
    %1188 = vmatpush1.msra.mxu0 0.0
    %1189 = vmatprep.subr.mxu0 0.0
    %1190 = vmatpush1.msra.mxu0 0.0
    %1191 = vmatprep.subr.mxu0 0.0
    %1192 = vmatpush1.msra.mxu0 0.0
    %1193 = vmatprep.subr.mxu0 0.0
    %1194 = vmatpush1.msra.mxu0 0.0
    %1195 = vmatprep.subr.mxu0 0.0
    %1196 = vmatpush1.msra.mxu0 0.0
    %1197 = vmatprep.subr.mxu0 0.0
    %1198 = vmatpush1.msra.mxu0 0.0
    %1199 = vmatprep.subr.mxu0 0.0
    %1200 = vmatpush1.msra.mxu0 0.0
    %1201 = vmatprep.subr.mxu0 0.0
    %1202 = vmatpush1.msra.mxu0 0.0
    %1203 = vmatprep.subr.mxu0 0.0
    %1204 = vmatpush1.msra.mxu0 0.0
    %1205 = vmatprep.subr.mxu0 0.0
    %1206 = vmatpush1.msra.mxu0 0.0
    %1207 = vmatprep.subr.mxu0 0.0
    %1208 = vmatpush1.msra.mxu0 0.0
    %1209 = vmatprep.subr.mxu0 0.0
    %1210 = vmatpush1.msra.mxu0 0.0
    %1211 = vmatprep.subr.mxu0 0.0
    %1212 = vmatpush1.msra.mxu0 0.0
    %1213 = vmatprep.subr.mxu0 0.0
    %1214 = vmatpush1.msra.mxu0 0.0
    %1215 = vmatprep.subr.mxu0 0.0
    %1216 = vmatpush1.msra.mxu0 0.0
    %1217 = vmatprep.subr.mxu0 0.0
    %1218 = vmatpush1.msra.mxu0 0.0
    %1219 = vmatprep.subr.mxu0 0.0
    %1220 = vmatpush1.msra.mxu0 0.0
    %1221 = vmatprep.subr.mxu0 0.0
    %1222 = vmatpush1.msra.mxu0 0.0
    %1223 = vmatprep.mubr.f32.mxu0 0.0
    %1224 = vmatmul.mubr.f32.gmra.mrb[0].mxu0 %v1154
    %v1225 = vpop.f32.mrb[0].mxu0
    %v1226 = vadd.f32 %v1152, %v1225
    %v1227 = vpop.f32.mrb[0].mxu0
    %1228 = vdwg.mxu0
    %1229 = vst [vmem:[#allocation2] sm:$0xf] %v1226
    // Predicated region
    $region38: #{tpu_custom_call.1} parent=1 // pred_check
      _
    $region39: #{tpu_custom_call.1} parent=1 // pred_check_branch
      %1231 = sbr.rel (0) target = $region41
    $region40: #{tpu_custom_call.1} parent=1 // pred_region
      %s1233 = ssub.s32 64, 64
      %1234 = vsyncadd [#allocation3], %s1233
      %s1236 = sshll.u32 [#allocation2], 4
      %s1237 = int_to_ptr.vmem [resolvable:$true] %s1236
      %1239 = dma.vmem_to_hbm [thread:$0]  %s1237, 64, %s9, [#allocation3]
    $region41: #{tpu_custom_call.1} parent=1 // pred_fallthru
      _
    // Predicated region
    $region42: #{tpu_custom_call.1} parent=1 // pred_check
      _
    $region43: #{tpu_custom_call.1} parent=1 // pred_check_branch
      %1241 = sbr.rel (0) target = $region45
    $region44: #{tpu_custom_call.1} parent=1 // pred_region
      %1242 = dma.done [#allocation3], 64
    $region45: #{tpu_custom_call.1} parent=1 // pred_fallthru
      _
    %1243 = vsyncpa [#allocation3], 1

</llo_original>
